<compile_context>
chip_gen: v7x
topology: tpu7x:2x2x1
jax: 0.10.0
libtpu: 0.0.40
codegen_flags: <defaults>
</compile_context>

<pallas_src>
import numpy as np
import jax
import jax.numpy as jnp
from jax.experimental import pallas as pl
from jax.experimental.pallas import tpu as pltpu

_LANES = 128   # lane width used for the tiny per-sample outputs


def _derive_vmem_budgets():
    """Per-generation tile caps + scoped-VMEM limit (review: v7x has 64 MiB)."""
    try:
        cap = int(pltpu.get_tpu_info().vmem_capacity_bytes)
    except Exception:
        cap = 64 << 20                       # conservative default (v7x per-TC)
    if cap >= (100 << 20):                   # v5e / v6e: 128 MiB per TensorCore
        patch_cap, cls_cap, limit = 8 << 20, 6 << 20, 96 << 20
    else:                                    # v7x: 64 MiB per TensorCore
        patch_cap, cls_cap, limit = 3 << 20, 3 << 20, 40 << 20
    limit = min(limit, max(cap - (8 << 20), 16 << 20))
    return dict(patch_tile_cap=patch_cap, cls_tile_cap=cls_cap, vmem_limit=limit)


# ----------------------------------------------------------------------------
# Kernel 1: patch loss (q == v pairs) + raw-teacher column sums for center2.
# grid = (G*B, N // TN); per grid step one (TN, P) tile of one sample.
# ----------------------------------------------------------------------------
def _make_patch_kernel(inv_student_temp, inv_temp2):
    inv_student_temp = float(inv_student_temp)
    inv_temp2 = float(inv_temp2)

    def kernel(t_patch_ref,   # VMEM (1, TN, P) streamed (bf16)
               s_patch_ref,   # VMEM (1, TN, P) streamed (bf16)
               mask_ref,      # VMEM (1, N, 1)  f32, resident per sample
               center2_ref,   # VMEM (1, P)     f32, resident
               ones_r_ref,    # VMEM (1, TN)    f32, resident reduction row
               ce_ref,        # VMEM (1, 1, LANES) per-sample Σ(ce·m) output
               colsum_ref,    # VMEM (1, 1, P)     per-sample raw col sums
               acc_ref):      # VMEM (1, P) f32 lane-dense CE accumulator
        nb = pl.program_id(1)
        last_nb = pl.num_programs(1) - 1
        tn = t_patch_ref.shape[1]

        tp = t_patch_ref[0].astype(jnp.float32)        # (TN, P)
        sp = s_patch_ref[0].astype(jnp.float32)        # (TN, P)
        c2 = center2_ref[...]                          # (1, P)
        onesr = ones_r_ref[...]                        # (1, TN)

        # mask is resident per sample; slice the current row block
        start = pl.multiple_of(nb * tn, tn)
        m = mask_ref[0, pl.ds(start, tn), :]           # (TN, 1)

        # reset the per-sample accumulators on the first row-block
        @pl.when(nb == 0)
        def _():
            acc_ref[...] = jnp.zeros_like(acc_ref)
            colsum_ref[...] = jnp.zeros_like(colsum_ref)

        # teacher patch softmax: center shift + 1/temp2 fused into the shift,
        # denominator via approximate EUP reciprocal (set approx=False if
        # tighter agreement with the reference is required).
        tl = (tp - c2) * inv_temp2
        te = jnp.exp(tl - jnp.max(tl, axis=-1, keepdims=True))
        tsoft = te * pl.reciprocal(jnp.sum(te, axis=-1, keepdims=True),
                                   approx=True)

        # student patch log-softmax with 1/student_temp folded in
        sl = sp * inv_student_temp
        ssh = sl - jnp.max(sl, axis=-1, keepdims=True)
        slog = ssh - jnp.log(jnp.sum(jnp.exp(ssh), axis=-1, keepdims=True))

        # masked cross entropy reduced over rows on the MXU (default precision,
        # f32 accumulate), accumulated lane-dense on the VPU.
        ce_cols = jnp.dot(onesr, tsoft * slog * m,
                          preferred_element_type=jnp.float32)      # (1, P)
        acc_ref[...] = acc_ref[...] + ce_cols

        # raw-teacher column sums (for the center2 EMA), also via MXU
        colsum_ref[0] = colsum_ref[0] + jnp.dot(
            onesr, tp, preferred_element_type=jnp.float32)          # (1, P)

        # finalize this sample on its last row-block: one lane reduce per sample
        @pl.when(nb == last_nb)
        def _():
            ce_ref[...] = jnp.sum(acc_ref[...]) * jnp.ones(
                (1, 1, _LANES), jnp.float32)

    return kernel


# ----------------------------------------------------------------------------
# Kernel 2: CLS loss (q != v pairs) + CLS center EMA, tiled over the batch.
# grid = (B // TB,); crops live on a leading axis (no sublane slicing).
# ----------------------------------------------------------------------------
def _make_cls_kernel(ngcrops, ncrops, batch, inv_student_temp, inv_temp,
                     center_momentum, lambda1):
    G, C, B = int(ngcrops), int(ncrops), int(batch)
    GB = G * B
    n1 = G * (C - 1)
    inv_student_temp = float(inv_student_temp)
    inv_temp = float(inv_temp)
    cm = float(center_momentum)
    lambda1 = float(lambda1)

    def kernel(t_cls_ref,       # VMEM (G, TB, D)
               s_cls_ref,       # VMEM (C, TB, D)
               center_ref,      # VMEM (1, D)  resident
               loss1_ref,       # VMEM (1, LANES) output (resident)
               new_center_ref,  # VMEM (1, D)  output (resident; colsum acc)
               acc_ref):        # SMEM (1,) f32 loss accumulator
        b = pl.program_id(0)
        last_b = pl.num_programs(0) - 1

        t = t_cls_ref[...].astype(jnp.float32)          # (G, TB, D)
        s = s_cls_ref[...].astype(jnp.float32)          # (C, TB, D)
        c = center_ref[...]                             # (1, D)

        @pl.when(b == 0)
        def _():
            acc_ref[0] = jnp.float32(0.0)
            new_center_ref[...] = jnp.zeros_like(new_center_ref)

        # teacher CLS softmax (exact divide: kernel 2 is not the hot path)
        tl = (t - c[None]) * inv_temp
        te = jnp.exp(tl - jnp.max(tl, axis=-1, keepdims=True))
        tsoft = te / jnp.sum(te, axis=-1, keepdims=True)

        # student CLS log-softmax (1/student_temp folded in)
        sl = s * inv_student_temp
        ssh = sl - jnp.max(sl, axis=-1, keepdims=True)
        slog = ssh - jnp.log(jnp.sum(jnp.exp(ssh), axis=-1, keepdims=True))

        # Σ_{q != v} t_q ⊙ s_v = (Σ_q t_q) ⊙ (Σ_v s_v) − Σ_{q<G} t_q ⊙ s_q ;
        # the crop axis is the leading dim, so these sums are cheap VPU adds.
        t_sum = jnp.sum(tsoft, axis=0)                  # (TB, D)
        s_sum = jnp.sum(slog, axis=0)                   # (TB, D)
        diag = jnp.sum(tsoft * slog[:G], axis=0)        # (TB, D)
        acc_ref[0] = acc_ref[0] + jnp.sum(t_sum * s_sum - diag)

        # raw teacher CLS column sums for the center EMA (exact f32 adds)
        new_center_ref[...] = new_center_ref[...] + jnp.sum(
            jnp.sum(t, axis=0), axis=0, keepdims=True)  # (1, D)

        @pl.when(b == last_b)
        def _():
            loss1_ref[...] = (-acc_ref[0] / (B * n1) * lambda1) * jnp.ones(
                (1, _LANES), jnp.float32)
            new_center_ref[...] = c * cm + new_center_ref[...] * ((1.0 - cm) / GB)

    return kernel


# ----------------------------------------------------------------------------
# Wrapper mirroring the PyTorch iBOTLoss module.
# ----------------------------------------------------------------------------
class IBotLossPallas:

    def __init__(self, out_dim, patch_out_dim, ngcrops, nlcrops,
                 warmup_teacher_temp, teacher_temp,
                 warmup_teacher_temp2, teacher_temp2,
                 warmup_teacher_temp_epochs, nepochs,
                 student_temp=0.1, center_momentum=0.9, center_momentum2=0.9,
                 lambda1=1.0, lambda2=1.0, mim_start_epoch=0,
                 patch_block_rows=None, patch_stream_dtype=jnp.bfloat16):
        self.student_temp = student_temp
        self.center_momentum = center_momentum
        self.center_momentum2 = center_momentum2
        self.ngcrops = ngcrops
        self.nlcrops = nlcrops
        self.ncrops = ngcrops + nlcrops
        self.lambda1 = lambda1
        self.lambda2 = lambda2
        self.patch_block_rows = patch_block_rows
        self.patch_stream_dtype = patch_stream_dtype

        budgets = _derive_vmem_budgets()
        self._patch_tile_cap = budgets["patch_tile_cap"]
        self._cls_tile_cap = budgets["cls_tile_cap"]
        self._vmem_limit = budgets["vmem_limit"]

        # buffers (deterministic zeros, as in the PyTorch module)
        self.center = jnp.zeros((1, out_dim), jnp.float32)
        self.center2 = jnp.zeros((1, 1, patch_out_dim), jnp.float32)
        self.teacher_temp_schedule = np.concatenate((
            np.linspace(warmup_teacher_temp, teacher_temp,
                        warmup_teacher_temp_epochs),
            np.ones(nepochs - warmup_teacher_temp_epochs) * teacher_temp))
        if mim_start_epoch == 0:
            self.teacher_temp2_schedule = np.concatenate((
                np.linspace(warmup_teacher_temp2, teacher_temp2,
                            warmup_teacher_temp_epochs),
                np.ones(nepochs - warmup_teacher_temp_epochs) * teacher_temp2))
        else:
            self.teacher_temp2_schedule = np.concatenate((
                np.ones(mim_start_epoch) * warmup_teacher_temp2,
                np.linspace(warmup_teacher_temp2, teacher_temp2,
                            warmup_teacher_temp_epochs),
                np.ones(nepochs - warmup_teacher_temp_epochs - mim_start_epoch)
                * teacher_temp2))

    def _pick_patch_rows(self, N, P, elem_bytes):
        """Row-block size TN: multiple of 16 dividing N, sized to the tile cap."""
        if self.patch_block_rows is not None:
            tn = int(self.patch_block_rows)
            assert N % tn == 0 and (tn % 16 == 0 or tn == N)
            return tn
        if N % 16 != 0:
            return N                                   # whole-sample block
        max_rows = max(16, self._patch_tile_cap // (P * elem_bytes))
        tn = 16
        for r in range(16, N + 1, 16):
            if N % r == 0 and r <= max_rows:
                tn = r
        return tn

    def _pick_cls_rows(self, B, D, C):
        if B % 8 != 0:
            return B
        max_rows = max(8, self._cls_tile_cap // (C * D * 4))
        tb = 8
        for r in range(8, B + 1, 8):
            if B % r == 0 and r <= max_rows:
                tb = r
        return tb

    def forward(self, student_output, teacher_output, student_local_cls,
                student_mask, epoch):
        student_cls, student_patch = student_output
        teacher_cls, teacher_patch = teacher_output
        if student_local_cls is not None:
            student_cls = jnp.concatenate([student_cls, student_local_cls], 0)

        temp = float(self.teacher_temp_schedule[epoch])
        temp2 = float(self.teacher_temp2_schedule[epoch])

        GB, D = teacher_cls.shape
        G, C = self.ngcrops, self.ncrops
        B = GB // G
        _, N, P = teacher_patch.shape
        assert student_cls.shape[0] == C * B
        assert student_patch.shape == (GB, N, P)

        # Stream the big patch tensors as bf16 (halves the dominant HBM
        # traffic; in a real pipeline the backbone should emit bf16 directly so
        # this cast fuses upstream).
        if self.patch_stream_dtype is not None:
            if teacher_patch.dtype != self.patch_stream_dtype:
                teacher_patch = teacher_patch.astype(self.patch_stream_dtype)
            if student_patch.dtype != self.patch_stream_dtype:
                student_patch = student_patch.astype(self.patch_stream_dtype)

        # mask: [G, B, h, w] -> [G*B, N, 1]  (resident per sample in kernel 1);
        # the per-sample mask sums are trivial -> computed here in plain JAX.
        mask3 = jnp.reshape(student_mask.astype(jnp.float32), (GB, N, 1))
        mask_sum = jnp.maximum(jnp.sum(jnp.reshape(mask3, (GB, N)), axis=1), 1.0)

        elem_bytes = jnp.dtype(teacher_patch.dtype).itemsize
        TN = self._pick_patch_rows(N, P, elem_bytes)
        NB = N // TN
        ones_r = jnp.ones((1, TN), jnp.float32)        # MXU reduction row

        # -------- kernel 1: patch CE + teacher-patch column sums -------------
        patch_kernel = _make_patch_kernel(1.0 / self.student_temp, 1.0 / temp2)
        ce_ps, colsum = pl.pallas_call(
            patch_kernel,
            out_shape=(jax.ShapeDtypeStruct((GB, 1, _LANES), jnp.float32),
                       jax.ShapeDtypeStruct((GB, 1, P), jnp.float32)),
            grid_spec=pltpu.PrefetchScalarGridSpec(
                num_scalar_prefetch=0,
                grid=(GB, NB),                         # (sample, row-block)
                in_specs=[
                    pl.BlockSpec((1, TN, P), lambda gb, nb: (gb, nb, 0)),
                    pl.BlockSpec((1, TN, P), lambda gb, nb: (gb, nb, 0)),
                    pl.BlockSpec((1, N, 1), lambda gb, nb: (gb, 0, 0)),   # mask
                    pl.BlockSpec((1, P), lambda gb, nb: (0, 0)),          # center2
                    pl.BlockSpec((1, TN), lambda gb, nb: (0, 0)),         # ones row
                ],
                out_specs=[
                    pl.BlockSpec((1, 1, _LANES), lambda gb, nb: (gb, 0, 0)),
                    pl.BlockSpec((1, 1, P), lambda gb, nb: (gb, 0, 0)),
                ],
                scratch_shapes=[pltpu.VMEM((1, P), jnp.float32)],
            ),
            compiler_params=pltpu.CompilerParams(
                dimension_semantics=("parallel", "arbitrary"),
                vmem_limit_bytes=self._vmem_limit),
        )(teacher_patch, student_patch, mask3,
          jnp.reshape(self.center2, (1, P)), ones_r)

        # -------- kernel 2: CLS CE + CLS center EMA (tiled over batch) -------
        TB = self._pick_cls_rows(B, D, C)
        t_cls3 = jnp.reshape(teacher_cls, (G, B, D))
        s_cls3 = jnp.reshape(student_cls, (C, B, D))
        cls_kernel = _make_cls_kernel(G, C, B, 1.0 / self.student_temp,
                                      1.0 / temp, self.center_momentum,
                                      self.lambda1)
        loss1_arr, new_center = pl.pallas_call(
            cls_kernel,
            out_shape=(jax.ShapeDtypeStruct((1, _LANES), jnp.float32),
                       jax.ShapeDtypeStruct((1, D), jnp.float32)),
            grid_spec=pltpu.PrefetchScalarGridSpec(
                num_scalar_prefetch=0,
                grid=(B // TB,),
                in_specs=[
                    pl.BlockSpec((G, TB, D), lambda b: (0, b, 0)),
                    pl.BlockSpec((C, TB, D), lambda b: (0, b, 0)),
                    pl.BlockSpec((1, D), lambda b: (0, 0)),
                ],
                out_specs=[
                    pl.BlockSpec((1, _LANES), lambda b: (0, 0)),
                    pl.BlockSpec((1, D), lambda b: (0, 0)),
                ],
                scratch_shapes=[pltpu.SMEM((1,), jnp.float32)],
            ),
            compiler_params=pltpu.CompilerParams(
                dimension_semantics=("arbitrary",),
                vmem_limit_bytes=self._vmem_limit),
        )(t_cls3, s_cls3, self.center)

        # -------- tiny finalization (kept outside the kernels) ---------------
        loss1 = loss1_arr[0, 0]
        loss2 = self.lambda2 * jnp.sum(-ce_ps[:, 0, 0] / mask_sum) / (G * B)

        # buffer (EMA) updates with the *old* centers
        # TODO(synk): jax.lax.psum the teacher statistics across data-parallel
        # workers here to match dist.all_reduce in the PyTorch reference.
        self.center = new_center
        patch_center = jnp.sum(colsum[:, 0, :], axis=0, keepdims=True) / (N * GB)
        self.center2 = (self.center2 * self.center_momentum2
                        + jnp.reshape(patch_center, (1, 1, P))
                        * (1.0 - self.center_momentum2))

        return dict(cls=loss1, patch=loss2, loss=loss1 + loss2)


# ----------------------------------------------------------------------------
# Pure-JAX reference mirroring the PyTorch forward (for the self-test).
# ----------------------------------------------------------------------------
def _ref_forward(center, center2, student_cls, student_patch, teacher_cls,
                 teacher_patch, student_local_cls, student_mask,
                 student_temp, temp, temp2, ngcrops, ncrops, lambda1, lambda2):
    s_cls = jnp.concatenate([student_cls, student_local_cls], 0) / student_temp
    s_cls_c = jnp.split(s_cls, ncrops)
    s_patch = student_patch / student_temp
    s_patch_c = jnp.split(s_patch, ngcrops)
    t_cls_c = jnp.split(jax.nn.softmax((teacher_cls - center) / temp, -1), ngcrops)
    t_patch_c = jnp.split(jax.nn.softmax((teacher_patch - center2) / temp2, -1),
                          ngcrops)
    mask_flat = student_mask.reshape(ngcrops, student_mask.shape[1], -1)
    tl1, n1, tl2, n2 = 0.0, 0, 0.0, 0
    for q in range(ngcrops):
        for v in range(ncrops):
            if v == q:
                l2 = jnp.sum(-t_patch_c[q] * jax.nn.log_softmax(s_patch_c[v], -1), -1)
                m = mask_flat[v].astype(jnp.float32)
                l2 = jnp.sum(l2 * m, -1) / jnp.clip(jnp.sum(m, -1), 1.0)
                tl2 = tl2 + jnp.mean(l2)
                n2 += 1
            else:
                l1 = jnp.sum(-t_cls_c[q] * jax.nn.log_softmax(s_cls_c[v], -1), -1)
                tl1 = tl1 + jnp.mean(l1)
                n1 += 1
    tl1 = tl1 / n1 * lambda1
    tl2 = tl2 / n2 * lambda2
    return tl1, tl2, tl1 + tl2


if __name__ == "__main__":
    out_dim = 128
    patch_out_dim = 128
    ngcrops = 2
    nlcrops = 2
    B = 2
    h = w = 8                      # n_patches = 64
    nepochs = 10
    epoch = 1

    key = jax.random.PRNGKey(0)
    k1, k2, k3, k4, k5, k6 = jax.random.split(key, 6)
    teacher_cls = jax.random.normal(k1, (ngcrops * B, out_dim), jnp.float32)
    teacher_patch = jax.random.normal(k2, (ngcrops * B, h * w, patch_out_dim),
                                      jnp.float32)
    student_cls = jax.random.normal(k3, (ngcrops * B, out_dim), jnp.float32)
    student_patch = jax.random.normal(k4, (ngcrops * B, h * w, patch_out_dim),
                                      jnp.float32)
    student_local_cls = jax.random.normal(k5, (nlcrops * B, out_dim), jnp.float32)
    student_mask = jax.random.uniform(k6, (ngcrops, B, h, w)) > 0.5

    loss_mod = IBotLossPallas(out_dim, patch_out_dim, ngcrops, nlcrops,
                              warmup_teacher_temp=0.04, teacher_temp=0.07,
                              warmup_teacher_temp2=0.04, teacher_temp2=0.07,
                              warmup_teacher_temp_epochs=3, nepochs=nepochs,
                              patch_block_rows=16)   # grid (G*B=4, NB=4) here

    out = loss_mod.forward((student_cls, student_patch),
                           (teacher_cls, teacher_patch),
                           student_local_cls, student_mask, epoch)
    jax.block_until_ready(out["loss"])

    # Self-check against the reference semantics.  The reference uses the
    # bf16-rounded patch tensors (the kernel streams them as bf16); tolerance
    # also absorbs the approx EUP reciprocal and default-precision MXU reduces.
    tp_r = teacher_patch.astype(jnp.bfloat16).astype(jnp.float32)
    sp_r = student_patch.astype(jnp.bfloat16).astype(jnp.float32)
    temp = float(loss_mod.teacher_temp_schedule[epoch])
    temp2 = float(loss_mod.teacher_temp2_schedule[epoch])
    ref1, ref2, ref_total = _ref_forward(
        jnp.zeros((1, out_dim), jnp.float32),
        jnp.zeros((1, 1, patch_out_dim), jnp.float32),
        student_cls, sp_r, teacher_cls, tp_r,
        student_local_cls, student_mask,
        0.1, temp, temp2, ngcrops, ngcrops + nlcrops, 1.0, 1.0)
    np.testing.assert_allclose(np.asarray(out["cls"]), np.asarray(ref1),
                               rtol=5e-3, atol=5e-4)
    np.testing.assert_allclose(np.asarray(out["patch"]), np.asarray(ref2),
                               rtol=1e-2, atol=2e-3)
    np.testing.assert_allclose(np.asarray(out["loss"]), np.asarray(ref_total),
                               rtol=1e-2, atol=2e-3)

    # center EMA buffers (momentum 0.9 of zero-initialized centers)
    exp_center = 0.1 * jnp.mean(teacher_cls, axis=0, keepdims=True)
    exp_center2 = 0.1 * jnp.mean(jnp.mean(tp_r, axis=1), axis=0, keepdims=True)
    np.testing.assert_allclose(np.asarray(loss_mod.center),
                               np.asarray(exp_center), rtol=1e-4, atol=1e-5)
    np.testing.assert_allclose(np.asarray(loss_mod.center2[0]),
                               np.asarray(exp_center2), rtol=1e-4, atol=1e-5)

    print("KERNEL_OK")
</pallas_src>

<mosaic_0001>
module attributes {stable_mosaic.version = 11 : i64} {
  func.func @kernel(%arg0: i32, %arg1: i32, %arg2: memref<1x16x128xbf16, #tpu.memory_space<vmem>>, %arg3: memref<1x16x128xbf16, #tpu.memory_space<vmem>>, %arg4: memref<1x64x1xf32, #tpu.memory_space<vmem>>, %arg5: memref<1x128xf32, #tpu.memory_space<vmem>>, %arg6: memref<1x16xf32, #tpu.memory_space<vmem>>, %arg7: memref<1x1x128xf32, #tpu.memory_space<vmem>>, %arg8: memref<1x1x128xf32, #tpu.memory_space<vmem>>, %arg9: memref<1x128xf32, #tpu.memory_space<vmem>>) attributes {dimension_semantics = [#tpu.dimension_semantics<parallel>, #tpu.dimension_semantics<arbitrary>], iteration_bounds = array<i64: 4, 4>, scalar_prefetch = 0 : i64, scratch_operands = 1 : i64, tpu.core_type = #tpu.core_type<tc>, window_params = [{transform_indices = @transform_0, window_bounds = array<i64: 1, 16, 128>}, {transform_indices = @transform_1, window_bounds = array<i64: 1, 16, 128>}, {transform_indices = @transform_2, window_bounds = array<i64: 1, 64, 1>}, {pipeline_mode = #tpu.pipeline_mode<synchronous>, transform_indices = @transform_3, window_bounds = array<i64: 1, 128>}, {pipeline_mode = #tpu.pipeline_mode<synchronous>, transform_indices = @transform_4, window_bounds = array<i64: 1, 16>}, {transform_indices = @transform_5, window_bounds = array<i64: 1, 1, 128>}, {transform_indices = @transform_6, window_bounds = array<i64: 1, 1, 128>}]} {
    %c0 = arith.constant 0 : index
    %c0_0 = arith.constant 0 : index
    %c0_1 = arith.constant 0 : index
    %0 = vector.load %arg2[%c0, %c0_0, %c0_1] : memref<1x16x128xbf16, #tpu.memory_space<vmem>>, vector<1x16x128xbf16>
    %1 = vector.shape_cast %0 : vector<1x16x128xbf16> to vector<16x128xbf16>
    %2 = arith.extf %1 : vector<16x128xbf16> to vector<16x128xf32>
    %c0_2 = arith.constant 0 : index
    %c0_3 = arith.constant 0 : index
    %c0_4 = arith.constant 0 : index
    %3 = vector.load %arg3[%c0_2, %c0_3, %c0_4] : memref<1x16x128xbf16, #tpu.memory_space<vmem>>, vector<1x16x128xbf16>
    %4 = vector.shape_cast %3 : vector<1x16x128xbf16> to vector<16x128xbf16>
    %5 = arith.extf %4 : vector<16x128xbf16> to vector<16x128xf32>
    %c0_5 = arith.constant 0 : index
    %c0_6 = arith.constant 0 : index
    %6 = vector.load %arg5[%c0_5, %c0_6] : memref<1x128xf32, #tpu.memory_space<vmem>>, vector<1x128xf32>
    %c0_7 = arith.constant 0 : index
    %c0_8 = arith.constant 0 : index
    %7 = vector.load %arg6[%c0_7, %c0_8] : memref<1x16xf32, #tpu.memory_space<vmem>>, vector<1x16xf32>
    %c16_i32 = arith.constant 16 : i32
    %8 = arith.muli %arg1, %c16_i32 : i32
    %9 = tpu.assume_multiple %8, 16 : i32
    %c0_9 = arith.constant 0 : index
    %10 = arith.index_cast %9 : i32 to index
    %c0_10 = arith.constant 0 : index
    %11 = vector.load %arg4[%c0_9, %10, %c0_10] : memref<1x64x1xf32, #tpu.memory_space<vmem>>, vector<1x16x1xf32>
    %12 = vector.shape_cast %11 : vector<1x16x1xf32> to vector<16x1xf32>
    %c0_i32 = arith.constant 0 : i32
    %13 = arith.cmpi eq, %arg1, %c0_i32 : i32
    %14 = arith.extui %13 : i1 to i32
    %c0_i32_11 = arith.constant 0 : i32
    %15 = arith.cmpi ne, %14, %c0_i32_11 : i32
    scf.if %15 {
      %cst_30 = arith.constant 0.000000e+00 : f32
      %59 = vector.broadcast %cst_30 : f32 to vector<1x128xf32>
      %c0_31 = arith.constant 0 : index
      %c0_32 = arith.constant 0 : index
      %60 = vector.load %arg9[%c0_31, %c0_32] : memref<1x128xf32, #tpu.memory_space<vmem>>, vector<1x128xf32>
      tpu.vector_store %arg9[%c0_31, %c0_32], %59 {strides = array<i32>} : memref<1x128xf32, #tpu.memory_space<vmem>>, vector<1x128xf32>,
      %cst_33 = arith.constant 0.000000e+00 : f32
      %61 = vector.broadcast %cst_33 : f32 to vector<1x1x128xf32>
      %c0_34 = arith.constant 0 : index
      %c0_35 = arith.constant 0 : index
      %c0_36 = arith.constant 0 : index
      %62 = vector.load %arg8[%c0_34, %c0_35, %c0_36] : memref<1x1x128xf32, #tpu.memory_space<vmem>>, vector<1x1x128xf32>
      tpu.vector_store %arg8[%c0_34, %c0_35, %c0_36], %61 {strides = array<i32>} : memref<1x1x128xf32, #tpu.memory_space<vmem>>, vector<1x1x128xf32>,
    } else {
    }
    %16 = vector.broadcast %6 : vector<1x128xf32> to vector<16x128xf32>
    %17 = arith.subf %2, %16 : vector<16x128xf32>
    %cst = arith.constant 18.181818 : f32
    %18 = vector.broadcast %cst : f32 to vector<16x128xf32>
    %19 = arith.mulf %17, %18 : vector<16x128xf32>
    %cst_12 = arith.constant dense<0xFF800000> : vector<16xf32>
    %20 = vector.multi_reduction <maximumf>, %19, %cst_12 [1] : vector<16x128xf32> to vector<16xf32>
    %21 = vector.shape_cast %20 : vector<16xf32> to vector<16x1xf32>
    %22 = vector.broadcast %21 : vector<16x1xf32> to vector<16x128xf32>
    %23 = arith.subf %19, %22 : vector<16x128xf32>
    %24 = math.exp %23 : vector<16x128xf32>
    %cst_13 = arith.constant dense<0.000000e+00> : vector<16xf32>
    %25 = vector.multi_reduction <add>, %24, %cst_13 [1] : vector<16x128xf32> to vector<16xf32>
    %26 = vector.shape_cast %25 : vector<16xf32> to vector<16x1xf32>
    %27 = tpu.reciprocal %26 {approx = true} : vector<16x1xf32> -> vector<16x1xf32>
    %28 = vector.broadcast %27 : vector<16x1xf32> to vector<16x128xf32>
    %29 = arith.mulf %24, %28 : vector<16x128xf32>
    %cst_14 = arith.constant 1.000000e+01 : f32
    %30 = vector.broadcast %cst_14 : f32 to vector<16x128xf32>
    %31 = arith.mulf %5, %30 : vector<16x128xf32>
    %cst_15 = arith.constant dense<0xFF800000> : vector<16xf32>
    %32 = vector.multi_reduction <maximumf>, %31, %cst_15 [1] : vector<16x128xf32> to vector<16xf32>
    %33 = vector.shape_cast %32 : vector<16xf32> to vector<16x1xf32>
    %34 = vector.broadcast %33 : vector<16x1xf32> to vector<16x128xf32>
    %35 = arith.subf %31, %34 : vector<16x128xf32>
    %36 = math.exp %35 : vector<16x128xf32>
    %cst_16 = arith.constant dense<0.000000e+00> : vector<16xf32>
    %37 = vector.multi_reduction <add>, %36, %cst_16 [1] : vector<16x128xf32> to vector<16xf32>
    %38 = vector.shape_cast %37 : vector<16xf32> to vector<16x1xf32>
    %39 = math.log %38 : vector<16x1xf32>
    %40 = vector.broadcast %39 : vector<16x1xf32> to vector<16x128xf32>
    %41 = arith.subf %35, %40 : vector<16x128xf32>
    %42 = arith.mulf %29, %41 : vector<16x128xf32>
    %43 = vector.broadcast %12 : vector<16x1xf32> to vector<16x128xf32>
    %44 = arith.mulf %42, %43 : vector<16x128xf32>
    %cst_17 = arith.constant dense<0.000000e+00> : vector<1x128xf32>
    %45 = tpu.matmul %7, %44, %cst_17 {dimension_numbers = #tpu.dot_dimension_numbers<[1], [0], [0], [1], [0, 0, 1, 1], [], []>} : vector<1x16xf32>, vector<16x128xf32>, vector<1x128xf32> -> vector<1x128xf32>
    %c0_18 = arith.constant 0 : index
    %c0_19 = arith.constant 0 : index
    %46 = vector.load %arg9[%c0_18, %c0_19] : memref<1x128xf32, #tpu.memory_space<vmem>>, vector<1x128xf32>
    %47 = arith.addf %46, %45 : vector<1x128xf32>
    %c0_20 = arith.constant 0 : index
    %c0_21 = arith.constant 0 : index
    %48 = vector.load %arg9[%c0_20, %c0_21] : memref<1x128xf32, #tpu.memory_space<vmem>>, vector<1x128xf32>
    tpu.vector_store %arg9[%c0_20, %c0_21], %47 {strides = array<i32>} : memref<1x128xf32, #tpu.memory_space<vmem>>, vector<1x128xf32>,
    %c0_22 = arith.constant 0 : index
    %c0_23 = arith.constant 0 : index
    %c0_24 = arith.constant 0 : index
    %49 = vector.load %arg8[%c0_22, %c0_23, %c0_24] : memref<1x1x128xf32, #tpu.memory_space<vmem>>, vector<1x1x128xf32>
    %50 = vector.shape_cast %49 : vector<1x1x128xf32> to vector<1x128xf32>
    %cst_25 = arith.constant dense<0.000000e+00> : vector<1x128xf32>
    %51 = tpu.matmul %7, %2, %cst_25 {dimension_numbers = #tpu.dot_dimension_numbers<[1], [0], [0], [1], [0, 0, 1, 1], [], []>} : vector<1x16xf32>, vector<16x128xf32>, vector<1x128xf32> -> vector<1x128xf32>
    %52 = arith.addf %50, %51 : vector<1x128xf32>
    %c0_26 = arith.constant 0 : index
    %c0_27 = arith.constant 0 : index
    %c0_28 = arith.constant 0 : index
    %53 = vector.load %arg8[%c0_26, %c0_27, %c0_28] : memref<1x1x128xf32, #tpu.memory_space<vmem>>, vector<1x1x128xf32>
    %54 = vector.shape_cast %53 : vector<1x1x128xf32> to vector<1x128xf32>
    %55 = vector.shape_cast %52 : vector<1x128xf32> to vector<1x1x128xf32>
    tpu.vector_store %arg8[%c0_26, %c0_27, %c0_28], %55 {strides = array<i32>} : memref<1x1x128xf32, #tpu.memory_space<vmem>>, vector<1x1x128xf32>,
    %c3_i32 = arith.constant 3 : i32
    %56 = arith.cmpi eq, %arg1, %c3_i32 : i32
    %57 = arith.extui %56 : i1 to i32
    %c0_i32_29 = arith.constant 0 : i32
    %58 = arith.cmpi ne, %57, %c0_i32_29 : i32
    scf.if %58 {
      %c0_30 = arith.constant 0 : index
      %c0_31 = arith.constant 0 : index
      %59 = vector.load %arg9[%c0_30, %c0_31] : memref<1x128xf32, #tpu.memory_space<vmem>>, vector<1x128xf32>
      %60 = vector.shape_cast %59 : vector<1x128xf32> to vector<1x1x128xf32>
      %cst_32 = arith.constant dense<0.000000e+00> : vector<1xf32>
      %61 = vector.multi_reduction <add>, %60, %cst_32 [1, 2] : vector<1x1x128xf32> to vector<1xf32>
      %62 = vector.shape_cast %61 : vector<1xf32> to vector<1x1x1xf32>
      %63 = vector.extract %62[0, 0, 0] : f32 from vector<1x1x1xf32>
      %cst_33 = arith.constant 1.000000e+00 : f32
      %64 = vector.broadcast %cst_33 : f32 to vector<1x1x128xf32>
      %65 = vector.broadcast %63 : f32 to vector<1x1x128xf32>
      %66 = arith.mulf %65, %64 : vector<1x1x128xf32>
      %c0_34 = arith.constant 0 : index
      %c0_35 = arith.constant 0 : index
      %c0_36 = arith.constant 0 : index
      %67 = vector.load %arg7[%c0_34, %c0_35, %c0_36] : memref<1x1x128xf32, #tpu.memory_space<vmem>>, vector<1x1x128xf32>
      tpu.vector_store %arg7[%c0_34, %c0_35, %c0_36], %66 {strides = array<i32>} : memref<1x1x128xf32, #tpu.memory_space<vmem>>, vector<1x1x128xf32>,
    } else {
    }
    return
  }
  func.func @transform_0(%arg0: i32, %arg1: i32) -> (i32, i32, i32) {
    %c0_i32 = arith.constant 0 : i32
    %c0_i32_0 = arith.constant 0 : i32
    return %arg0, %arg1, %c0_i32 : i32, i32, i32
  }
  func.func @transform_1(%arg0: i32, %arg1: i32) -> (i32, i32, i32) {
    %c0_i32 = arith.constant 0 : i32
    %c0_i32_0 = arith.constant 0 : i32
    return %arg0, %arg1, %c0_i32 : i32, i32, i32
  }
  func.func @transform_2(%arg0: i32, %arg1: i32) -> (i32, i32, i32) {
    %c0_i32 = arith.constant 0 : i32
    %c0_i32_0 = arith.constant 0 : i32
    %c0_i32_1 = arith.constant 0 : i32
    return %arg0, %c0_i32, %c0_i32_0 : i32, i32, i32
  }
  func.func @transform_3(%arg0: i32, %arg1: i32) -> (i32, i32) {
    %c0_i32 = arith.constant 0 : i32
    %c0_i32_0 = arith.constant 0 : i32
    %c0_i32_1 = arith.constant 0 : i32
    return %c0_i32, %c0_i32_0 : i32, i32
  }
  func.func @transform_4(%arg0: i32, %arg1: i32) -> (i32, i32) {
    %c0_i32 = arith.constant 0 : i32
    %c0_i32_0 = arith.constant 0 : i32
    %c0_i32_1 = arith.constant 0 : i32
    return %c0_i32, %c0_i32_0 : i32, i32
  }
  func.func @transform_5(%arg0: i32, %arg1: i32) -> (i32, i32, i32) {
    %c0_i32 = arith.constant 0 : i32
    %c0_i32_0 = arith.constant 0 : i32
    %c0_i32_1 = arith.constant 0 : i32
    return %arg0, %c0_i32, %c0_i32_0 : i32, i32, i32
  }
  func.func @transform_6(%arg0: i32, %arg1: i32) -> (i32, i32, i32) {
    %c0_i32 = arith.constant 0 : i32
    %c0_i32_0 = arith.constant 0 : i32
    %c0_i32_1 = arith.constant 0 : i32
    return %arg0, %c0_i32, %c0_i32_0 : i32, i32, i32
  }
}

</mosaic_0001>

<llo_original>
// kernel: tpu_custom_call.1
$region0: #{tpu_custom_call.1}
  #allocation0 [shape = 'u32[]', space=smem, size = 0x4, offset = 0x4, fixed_abs, tag = 'smem constant byte address 0x4 - core index']
  #allocation1 [shape = 'u32[144,128]{1,0:T(1,128)}', space=vmem, size = 0x12000, scoped, tag = 'internal scratch']
  #allocation2 [shape = 'f32[1,128]{1,0:T(1,128)}', space=vmem, size = 0x200, scoped, tag = 'scratch operand']
  %s0 = inlined_call_operand.vmem [shape: bf16[4,64,128], index: 0, kind: input, shape index: {}]
  %s1 = inlined_call_operand.vmem [shape: bf16[4,64,128], index: 1, kind: input, shape index: {}]
  %s2 = inlined_call_operand.vmem [shape: f32[4,64,1], index: 2, kind: input, shape index: {}]
  %s3 = inlined_call_operand.vmem [shape: f32[1,128], index: 3, kind: input, shape index: {}]
  %s4 = inlined_call_operand.vmem [shape: f32[1,16], index: 4, kind: input, shape index: {}]
  %s5 = inlined_call_operand.hbm [shape: f32[4,1,128], index: 5, kind: output, shape index: {0}]
  %s6 = inlined_call_operand.hbm [shape: f32[4,1,128], index: 6, kind: output, shape index: {1}]
  %7 = xla_tuple %s5, %s6
  %s8 = sld [smem:[#allocation0]]
  $region69: #{tpu_custom_call.1} parent=0
    _
  %s10 = ssub.s32 1, %s8
  %s11 = scalar_select 0, %s10, %s8
  $region1: #{tpu_custom_call.1} parent=0
    #allocation3 [shape = 'u8[1024]{0}', space=vmem, size = 0x400, scoped, tag = 'output window, operand 0']
    #allocation4 [shape = 's32[2]{0}', space=sflag, size = 0x8, scoped, tag = 'scoped memory for tpu_custom_call.1']
    #allocation5 [shape = 'u8[1024]{0}', space=vmem, size = 0x400, scoped, tag = 'output window, operand 1']
    #allocation6 [shape = 's32[2]{0}', space=sflag, size = 0x8, scoped, tag = 'scoped memory for tpu_custom_call.1']
    %12 = vsyncpa [#allocation4], 0
    %s13 = scalar_lea.sflag [#allocation4], 1
    %14 = vsyncpa %s13, 0
    %15 = vsyncpa [#allocation6], 0
    %s16 = scalar_lea.sflag [#allocation6], 1
    %17 = vsyncpa %s16, 0
    loop: start=0, step=1, limit=18
    $region2: #{tpu_custom_call.1} parent=1 // loop_pre_header
      _
    $region3: #{tpu_custom_call.1} parent=1 // loop_header
      %s19 = sphi 0, %s23
      %p20 = scmp.ge.s32.totalorder %s19, 18
      %s26 = sphi 0, %s38
      %s27 = sphi 0, %s34
      %s28 = sphi 0, %s26
      %s29 = sphi 0, %s27
      %s30 = sphi 0, %s28
      %s31 = sphi 0, %s29
      %s43 = sphi 0, %s45
      %s46 = sphi 0, %s43
      %s47 = sphi 0, %s46
      %s63 = sphi 0, %s47
      %s71 = sphi 0, %s73
      %s74 = sphi 0, %s71
      %s75 = sphi 0, %s74
      %s91 = sphi 0, %s75
      %s97 = sphi 0, %s99
      %s100 = sphi 0, %s97
      %s101 = sphi 0, %s100
      %s117 = sphi 0, %s101
      %s121 = sphi 0, %s121
      %s123 = sphi 0, %s121
      %s124 = sphi 0, %s123
      %s138 = sphi 0, %s124
      %s142 = sphi 0, %s142
      %s144 = sphi 0, %s142
      %s145 = sphi 0, %s144
      %s159 = sphi 0, %s145
      %s165 = sphi 0, %s167
      %s168 = sphi 0, %s165
      %s169 = sphi 0, %s168
      %s185 = sphi 0, %s169
      %s191 = sphi 0, %s193
      %s194 = sphi 0, %s191
      %s195 = sphi 0, %s194
      %s211 = sphi 0, %s195
    $region4: #{tpu_custom_call.1} parent=1 // loop_header_branch
      %22 = sbr.rel (%p20) target = $region8
    $region5: #{tpu_custom_call.1} parent=1 // loop_body
      %s24 = ssub.s32 %s19, 1
      %s25 = ssub.s32 %s19, 2
      %s32 = sadd.s32 1, %s27
      %p33 = scmp.ge.s32.totalorder %s32, 4
      %s34 = scalar_select %p33, 0, %s32
      %s35 = sadd.s32 1, %s26
      %s36 = scalar_select %p33, %s35, %s26
      %p37 = scmp.ge.s32.totalorder %s36, 4
      %s38 = scalar_select %p37, 0, %s36
      %s39 = ssub.s32 %s26, %s38
      %s40 = ssub.s32 %s27, %s34
      %s41 = sor.u32 %s39, %s40
      %p42 = scmp.eq.s32.totalorder %s41, 0
      %s44 = sadd.s32 %s43, 1
      %s45 = scalar_select %p42, %s43, %s44
      %p48 = pneg %p42
      %p49 = scmp.eq.s32.totalorder %s19, 15
      %p50 = por %p48, %p49
      %p51 = scmp.ne.s32.totalorder %s43, %s46
      %p52 = scmp.eq.s32.totalorder %s19, 0
      %p53 = por %p51, %p52
      %p54 = scmp.ne.s32.totalorder %s43, %s46
      %p55 = scmp.eq.s32.totalorder %s24, 15
      %p56 = por %p54, %p55
      %p57 = scmp.ne.s32.totalorder %s46, %s47
      %p58 = scmp.eq.s32.totalorder %s24, 0
      %p59 = por %p57, %p58
      %p60 = scmp.ne.s32.totalorder %s46, %s47
      %p61 = scmp.eq.s32.totalorder %s25, 15
      %p62 = por %p60, %p61
      %p64 = scmp.ne.s32.totalorder %s47, %s63
      %p65 = scmp.eq.s32.totalorder %s25, 0
      %p66 = por %p64, %p65
      %s67 = ssub.s32 %s26, %s38
      %s68 = ssub.s32 %s27, %s34
      %s69 = sor.u32 %s67, %s68
      %p70 = scmp.eq.s32.totalorder %s69, 0
      %s72 = sadd.s32 %s71, 1
      %s73 = scalar_select %p70, %s71, %s72
      %p76 = pneg %p70
      %p77 = scmp.eq.s32.totalorder %s19, 15
      %p78 = por %p76, %p77
      %p79 = scmp.ne.s32.totalorder %s71, %s74
      %p80 = scmp.eq.s32.totalorder %s19, 0
      %p81 = por %p79, %p80
      %p82 = scmp.ne.s32.totalorder %s71, %s74
      %p83 = scmp.eq.s32.totalorder %s24, 15
      %p84 = por %p82, %p83
      %p85 = scmp.ne.s32.totalorder %s74, %s75
      %p86 = scmp.eq.s32.totalorder %s24, 0
      %p87 = por %p85, %p86
      %p88 = scmp.ne.s32.totalorder %s74, %s75
      %p89 = scmp.eq.s32.totalorder %s25, 15
      %p90 = por %p88, %p89
      %p92 = scmp.ne.s32.totalorder %s75, %s91
      %p93 = scmp.eq.s32.totalorder %s25, 0
      %p94 = por %p92, %p93
      %s95 = ssub.s32 %s26, %s38
      %p96 = scmp.eq.s32.totalorder %s95, 0
      %s98 = sadd.s32 %s97, 1
      %s99 = scalar_select %p96, %s97, %s98
      %p102 = pneg %p96
      %p103 = scmp.eq.s32.totalorder %s19, 15
      %p104 = por %p102, %p103
      %p105 = scmp.ne.s32.totalorder %s97, %s100
      %p106 = scmp.eq.s32.totalorder %s19, 0
      %p107 = por %p105, %p106
      %p108 = scmp.ne.s32.totalorder %s97, %s100
      %p109 = scmp.eq.s32.totalorder %s24, 15
      %p110 = por %p108, %p109
      %p111 = scmp.ne.s32.totalorder %s100, %s101
      %p112 = scmp.eq.s32.totalorder %s24, 0
      %p113 = por %p111, %p112
      %p114 = scmp.ne.s32.totalorder %s100, %s101
      %p115 = scmp.eq.s32.totalorder %s25, 15
      %p116 = por %p114, %p115
      %p118 = scmp.ne.s32.totalorder %s101, %s117
      %p119 = scmp.eq.s32.totalorder %s25, 0
      %p120 = por %p118, %p119
      %s122 = sadd.s32 %s121, 1
      %p125 = scmp.eq.s32.totalorder %s19, 15
      %p126 = scmp.ne.s32.totalorder %s121, %s123
      %p127 = scmp.eq.s32.totalorder %s19, 0
      %p128 = por %p126, %p127
      %p129 = scmp.ne.s32.totalorder %s121, %s123
      %p130 = scmp.eq.s32.totalorder %s24, 15
      %p131 = por %p129, %p130
      %p132 = scmp.ne.s32.totalorder %s123, %s124
      %p133 = scmp.eq.s32.totalorder %s24, 0
      %p134 = por %p132, %p133
      %p135 = scmp.ne.s32.totalorder %s123, %s124
      %p136 = scmp.eq.s32.totalorder %s25, 15
      %p137 = por %p135, %p136
      %p139 = scmp.ne.s32.totalorder %s124, %s138
      %p140 = scmp.eq.s32.totalorder %s25, 0
      %p141 = por %p139, %p140
      %s143 = sadd.s32 %s142, 1
      %p146 = scmp.eq.s32.totalorder %s19, 15
      %p147 = scmp.ne.s32.totalorder %s142, %s144
      %p148 = scmp.eq.s32.totalorder %s19, 0
      %p149 = por %p147, %p148
      %p150 = scmp.ne.s32.totalorder %s142, %s144
      %p151 = scmp.eq.s32.totalorder %s24, 15
      %p152 = por %p150, %p151
      %p153 = scmp.ne.s32.totalorder %s144, %s145
      %p154 = scmp.eq.s32.totalorder %s24, 0
      %p155 = por %p153, %p154
      %p156 = scmp.ne.s32.totalorder %s144, %s145
      %p157 = scmp.eq.s32.totalorder %s25, 15
      %p158 = por %p156, %p157
      %p160 = scmp.ne.s32.totalorder %s145, %s159
      %p161 = scmp.eq.s32.totalorder %s25, 0
      %p162 = por %p160, %p161
      %s163 = ssub.s32 %s26, %s38
      %p164 = scmp.eq.s32.totalorder %s163, 0
      %s166 = sadd.s32 %s165, 1
      %s167 = scalar_select %p164, %s165, %s166
      %p170 = pneg %p164
      %p171 = scmp.eq.s32.totalorder %s19, 15
      %p172 = por %p170, %p171
      %p173 = scmp.ne.s32.totalorder %s165, %s168
      %p174 = scmp.eq.s32.totalorder %s19, 0
      %p175 = por %p173, %p174
      %p176 = scmp.ne.s32.totalorder %s165, %s168
      %p177 = scmp.eq.s32.totalorder %s24, 15
      %p178 = por %p176, %p177
      %p179 = scmp.ne.s32.totalorder %s168, %s169
      %p180 = scmp.eq.s32.totalorder %s24, 0
      %p181 = por %p179, %p180
      %p182 = scmp.ne.s32.totalorder %s168, %s169
      %p183 = scmp.eq.s32.totalorder %s25, 15
      %p184 = por %p182, %p183
      %p186 = scmp.ne.s32.totalorder %s169, %s185
      %p187 = scmp.eq.s32.totalorder %s25, 0
      %p188 = por %p186, %p187
      %s189 = ssub.s32 %s26, %s38
      %p190 = scmp.eq.s32.totalorder %s189, 0
      %s192 = sadd.s32 %s191, 1
      %s193 = scalar_select %p190, %s191, %s192
      %p196 = pneg %p190
      %p197 = scmp.eq.s32.totalorder %s19, 15
      %p198 = por %p196, %p197
      %p199 = scmp.ne.s32.totalorder %s191, %s194
      %p200 = scmp.eq.s32.totalorder %s19, 0
      %p201 = por %p199, %p200
      %p202 = scmp.ne.s32.totalorder %s191, %s194
      %p203 = scmp.eq.s32.totalorder %s24, 15
      %p204 = por %p202, %p203
      %p205 = scmp.ne.s32.totalorder %s194, %s195
      %p206 = scmp.eq.s32.totalorder %s24, 0
      %p207 = por %p205, %p206
      %p208 = scmp.ne.s32.totalorder %s194, %s195
      %p209 = scmp.eq.s32.totalorder %s25, 15
      %p210 = por %p208, %p209
      %p212 = scmp.ne.s32.totalorder %s195, %s211
      %p213 = scmp.eq.s32.totalorder %s25, 0
      %p214 = por %p212, %p213
      %p215 = scmp.le.s32.totalorder 1, %s19
      %p216 = scmp.lt.s32.totalorder %s19, 17
      %p217 = pnand %p215, %p216
      %p218 = pneg %p217
      // Predicated region
      $region9: #{tpu_custom_call.1} parent=5 // pred_check
        _
      $region10: #{tpu_custom_call.1} parent=5 // pred_check_branch
        %220 = sbr.rel (%p217) target = $region12
      $region11: #{tpu_custom_call.1} parent=5 // pred_region
        %s221 = ssub.s32 %s19, 1
        // Predicated region
        $region13: #{tpu_custom_call.1} parent=11 // pred_check
          %p222 = pneg %p134
        $region14: #{tpu_custom_call.1} parent=11 // pred_check_branch
          %224 = sbr.rel (%p222) target = $region16
        $region15: #{tpu_custom_call.1} parent=11 // pred_region
          _
        $region16: #{tpu_custom_call.1} parent=11 // pred_fallthru
          _
        // Predicated region
        $region17: #{tpu_custom_call.1} parent=11 // pred_check
          %p225 = pneg %p155
        $region18: #{tpu_custom_call.1} parent=11 // pred_check_branch
          %227 = sbr.rel (%p225) target = $region20
        $region19: #{tpu_custom_call.1} parent=11 // pred_region
          _
        $region20: #{tpu_custom_call.1} parent=11 // pred_fallthru
          _
      $region12: #{tpu_custom_call.1} parent=5 // pred_fallthru
        _
      %p228 = scmp.lt.s32.totalorder %s19, 16
      // Predicated region
      $region21: #{tpu_custom_call.1} parent=5 // pred_check
        %p229 = pneg %p228
      $region22: #{tpu_custom_call.1} parent=5 // pred_check_branch
        %231 = sbr.rel (%p229) target = $region24
      $region23: #{tpu_custom_call.1} parent=5 // pred_region
        // Predicated region
        $region25: #{tpu_custom_call.1} parent=23 // pred_check
          %p232 = pneg %p53
        $region26: #{tpu_custom_call.1} parent=23 // pred_check_branch
          %234 = sbr.rel (%p232) target = $region28
        $region27: #{tpu_custom_call.1} parent=23 // pred_region
          %s235 = smul.u32 2, %s27
          %p236 = scmp.lt.s32.totalorder %s26, 3
          %s237 = scalar_select %p236, %s26, 3
          %p238 = scmp.lt.s32.totalorder %s235, 7
          %s239 = scalar_select %p238, %s235, 7
          %s240 = smul.addr %s237, 8
          %s241 = sadd.s32 %s239, %s240
          %s242 = smul.addr %s241, 4
          %s243 = scalar_lea.vmem %s0, %s242
          %s244 = smul.u32 2, %s27
        $region28: #{tpu_custom_call.1} parent=23 // pred_fallthru
          _
        // Predicated region
        $region29: #{tpu_custom_call.1} parent=23 // pred_check
          %p245 = pneg %p81
        $region30: #{tpu_custom_call.1} parent=23 // pred_check_branch
          %247 = sbr.rel (%p245) target = $region32
        $region31: #{tpu_custom_call.1} parent=23 // pred_region
          %s248 = smul.u32 2, %s27
          %p249 = scmp.lt.s32.totalorder %s26, 3
          %s250 = scalar_select %p249, %s26, 3
          %p251 = scmp.lt.s32.totalorder %s248, 7
          %s252 = scalar_select %p251, %s248, 7
          %s253 = smul.addr %s250, 8
          %s254 = sadd.s32 %s252, %s253
          %s255 = smul.addr %s254, 4
          %s256 = scalar_lea.vmem %s1, %s255
          %s257 = smul.u32 2, %s27
        $region32: #{tpu_custom_call.1} parent=23 // pred_fallthru
          _
        // Predicated region
        $region33: #{tpu_custom_call.1} parent=23 // pred_check
          %p258 = pneg %p107
        $region34: #{tpu_custom_call.1} parent=23 // pred_check_branch
          %260 = sbr.rel (%p258) target = $region36
        $region35: #{tpu_custom_call.1} parent=23 // pred_region
          %p261 = scmp.lt.s32.totalorder %s26, 3
          %s262 = scalar_select %p261, %s26, 3
          %s263 = smul.addr %s262, 8
          %s264 = smul.addr %s263, 8
          %s265 = scalar_lea.vmem %s2, %s264
        $region36: #{tpu_custom_call.1} parent=23 // pred_fallthru
          _
      $region24: #{tpu_custom_call.1} parent=5 // pred_fallthru
        _
      %p266 = scmp.le.s32.totalorder 1, %s19
      %p267 = scmp.lt.s32.totalorder %s19, 17
      %p268 = pnand %p266, %p267
      %p269 = pneg %p268
      // Predicated region
      $region37: #{tpu_custom_call.1} parent=5 // pred_check
        _
      $region38: #{tpu_custom_call.1} parent=5 // pred_check_branch
        %271 = sbr.rel (%p268) target = $region40
      $region39: #{tpu_custom_call.1} parent=5 // pred_region
        %s272 = ssub.s32 %s19, 1
        %s273 = smul.u32 2, %s29
        %p274 = scmp.lt.s32.totalorder %s28, 3
        %s275 = scalar_select %p274, %s28, 3
        %p276 = scmp.lt.s32.totalorder %s273, 7
        %s277 = scalar_select %p276, %s273, 7
        %s278 = smul.addr %s275, 8
        %s279 = sadd.s32 %s277, %s278
        %s280 = smul.addr %s279, 4
        %s281 = scalar_lea.vmem %s0, %s280
        %p282 = pneg %p59
        %p283 = pneg %p56
        %s284 = smul.u32 2, %s29
        %p285 = scmp.lt.s32.totalorder %s28, 3
        %s286 = scalar_select %p285, %s28, 3
        %p287 = scmp.lt.s32.totalorder %s284, 7
        %s288 = scalar_select %p287, %s284, 7
        %s289 = smul.addr %s286, 8
        %s290 = sadd.s32 %s288, %s289
        %s291 = smul.addr %s290, 4
        %s292 = scalar_lea.vmem %s1, %s291
        %p293 = pneg %p87
        %p294 = pneg %p84
        %p295 = scmp.lt.s32.totalorder %s28, 3
        %s296 = scalar_select %p295, %s28, 3
        %s297 = smul.addr %s296, 8
        %s298 = smul.addr %s297, 8
        %s299 = scalar_lea.vmem %s2, %s298
        %p300 = pneg %p113
        %p301 = pneg %p110
        %p302 = pneg %p134
        %p303 = pneg %p131
        %p304 = pneg %p155
        %p305 = pneg %p152
        %p306 = pneg %p181
        %p307 = pneg %p178
        %s308 = sand.u32 %s168, 1
        %s309 = scalar_lea.sflag [#allocation4], %s308
        %s310 = sand.u32 %s168, 1
        %s311 = scalar_lea.vmem [#allocation3], %s310
        %p312 = pneg %p207
        %p313 = pneg %p204
        %s314 = sand.u32 %s194, 1
        %s315 = scalar_lea.sflag [#allocation6], %s314
        %s316 = sand.u32 %s194, 1
        %s317 = scalar_lea.vmem [#allocation5], %s316
        %s318 = smul.u32 2, %s29
        %p319 = scmp.lt.s32.totalorder %s28, 3
        %s320 = scalar_select %p319, %s28, 3
        %p321 = scmp.lt.s32.totalorder %s318, 7
        %s322 = scalar_select %p321, %s318, 7
        %s323 = smul.addr %s320, 8
        %s324 = sadd.s32 %s322, %s323
        %s325 = smul.addr %s324, 4
        %s326 = scalar_lea.vmem %s0, %s325
        %s327 = smul.u32 2, %s29
        %s328 = smul.u32 2, %s29
        %p329 = scmp.lt.s32.totalorder %s28, 3
        %s330 = scalar_select %p329, %s28, 3
        %p331 = scmp.lt.s32.totalorder %s328, 7
        %s332 = scalar_select %p331, %s328, 7
        %s333 = smul.addr %s330, 8
        %s334 = sadd.s32 %s332, %s333
        %s335 = smul.addr %s334, 4
        %s336 = scalar_lea.vmem %s1, %s335
        %s337 = smul.u32 2, %s29
        %p338 = scmp.lt.s32.totalorder %s28, 3
        %s339 = scalar_select %p338, %s28, 3
        %s340 = smul.addr %s339, 8
        %s341 = smul.addr %s340, 8
        %s342 = scalar_lea.vmem %s2, %s341
        %v343 = vld [vmem:[%s326] sm:$0xf]
        %v344 = vld [vmem:[%s326 + $0x4] sm:$0xf]
        %v345 = vunpack.c.l.bf16 %v343
        %v346 = vunpack.c.l.bf16 %v344
        %v347 = vld [vmem:[%s336] sm:$0xf]
        %v348 = vld [vmem:[%s336 + $0x4] sm:$0xf]
        %v349 = vunpack.c.l.bf16 %v347
        %v350 = vunpack.c.l.bf16 %v348
        %v351 = vld [vmem:[%s3] sm:$0x1]
        %v352 = vld [vmem:[%s4] sm:$0x1]
        %s353 = smul.u32 %s29, 16
        %s354 = scalar_lea.vmem %s342, %s353
        %v355 = vld [vmem:[%s354] sm:$0xff]
        %v356 = vld [vmem:[%s354 + $0x8] sm:$0xff]
        %p357 = scmp.eq.s32.totalorder %s29, 0
        // Predicated region
        $region41: #{tpu_custom_call.1} parent=39 // pred_check
          %p358 = pneg %p357
        $region42: #{tpu_custom_call.1} parent=39 // pred_check_branch
          %360 = sbr.rel (%p358) target = $region44
        $region43: #{tpu_custom_call.1} parent=39 // pred_region
          %361 = vst [vmem:[#allocation2] sm:$0x1] 0.0
          %362 = vst [vmem:[%s317] sm:$0x1] 0.0
        $region44: #{tpu_custom_call.1} parent=39 // pred_fallthru
          _
        %v364 = vlaneseq
        %v365 = vshrl.u32 %v364, 7
        %v366 = vsub.s32 0, %v365
        %v367 = vrot.slane %v351, %v366
        %v369 = vsub.f32 %v345, %v367
        %v370 = vsub.f32 %v346, %v367
        %v371 = vmul.f32 %v369, 18.181818
        %v372 = vmul.f32 %v370, 18.181818
        %373 = vmax.xlane.f32.xlu0 %v371
        %v374 = vpop.xlane.xlu0 %373
        %375 = vmax.xlane.f32.xlu0 %v372
        %v376 = vpop.xlane.xlu0 %375
        %v377 = vsub.f32 %v371, %v374
        %v378 = vsub.f32 %v372, %v376
        %v379 = vmul.f32 %v377, 1.442695
        %v380 = vpow.pop %v379
        %v381 = vmul.f32 %v378, 1.442695
        %v382 = vpow.pop %v381
        %383 = vadd.xlane.f32.xlu0 %v380
        %v384 = vpop.xlane.xlu0 %383
        %385 = vadd.xlane.f32.xlu0 %v382
        %v386 = vpop.xlane.xlu0 %385
        %v387 = vrcp.pop %v384
        %v388 = vrcp.pop %v386
        %v389 = vmul.f32 %v380, %v387
        %v390 = vmul.f32 %v382, %v388
        %v391 = vmul.f32 %v349, 10.0
        %v392 = vmul.f32 %v350, 10.0
        %393 = vmax.xlane.f32.xlu0 %v391
        %v394 = vpop.xlane.xlu0 %393
        %395 = vmax.xlane.f32.xlu0 %v392
        %v396 = vpop.xlane.xlu0 %395
        %v397 = vsub.f32 %v391, %v394
        %v398 = vsub.f32 %v392, %v396
        %v399 = vmul.f32 %v397, 1.442695
        %v400 = vpow.pop %v399
        %v401 = vmul.f32 %v398, 1.442695
        %v402 = vpow.pop %v401
        %403 = vadd.xlane.f32.xlu0 %v400
        %v404 = vpop.xlane.xlu0 %403
        %405 = vadd.xlane.f32.xlu0 %v402
        %v406 = vpop.xlane.xlu0 %405
        %v407 = vlog2.pop %v404
        %v408 = vmul.f32 %v407, 0.6931472
        %v409 = vlog2.pop %v406
        %v410 = vmul.f32 %v409, 0.6931472
        %v411 = vsub.f32 %v397, %v408
        %v412 = vsub.f32 %v398, %v410
        %v413 = vmul.f32 %v389, %v411
        %v414 = vmul.f32 %v390, %v412
        %416 = vset.pattern.permute.xlu0 0
        %417 = vperm.xlu0 %416, %v355
        %v418 = vpop.permute.xlu0 %417
        %421 = vset.pattern.permute.xlu0 0
        %422 = vperm.xlu0 %421, %v356
        %v423 = vpop.permute.xlu0 %422
        %v425 = vmul.f32 %v413, %v418
        %v426 = vmul.f32 %v414, %v423
        %vm427 = vcmask 130048
        %v429 = vsel %vm427, %v352, 0
        %431 = vmatprep.subr.mxu0 0.0
        %432 = vmatpush1.msra.mxu0 %v425
        %433 = vmatprep.subr.mxu0 0.0
        %434 = vmatpush1.msra.mxu0 %v426
        %435 = vmatprep.subr.mxu0 0.0
        %436 = vmatpush1.msra.mxu0 0.0
        %437 = vmatprep.subr.mxu0 0.0
        %438 = vmatpush1.msra.mxu0 0.0
        %439 = vmatprep.subr.mxu0 0.0
        %440 = vmatpush1.msra.mxu0 0.0
        %441 = vmatprep.subr.mxu0 0.0
        %442 = vmatpush1.msra.mxu0 0.0
        %443 = vmatprep.subr.mxu0 0.0
        %444 = vmatpush1.msra.mxu0 0.0
        %445 = vmatprep.subr.mxu0 0.0
        %446 = vmatpush1.msra.mxu0 0.0
        %447 = vmatprep.subr.mxu0 0.0
        %448 = vmatpush1.msra.mxu0 0.0
        %449 = vmatprep.subr.mxu0 0.0
        %450 = vmatpush1.msra.mxu0 0.0
        %451 = vmatprep.subr.mxu0 0.0
        %452 = vmatpush1.msra.mxu0 0.0
        %453 = vmatprep.subr.mxu0 0.0
        %454 = vmatpush1.msra.mxu0 0.0
        %455 = vmatprep.subr.mxu0 0.0
        %456 = vmatpush1.msra.mxu0 0.0
        %457 = vmatprep.subr.mxu0 0.0
        %458 = vmatpush1.msra.mxu0 0.0
        %459 = vmatprep.subr.mxu0 0.0
        %460 = vmatpush1.msra.mxu0 0.0
        %461 = vmatprep.subr.mxu0 0.0
        %462 = vmatpush1.msra.mxu0 0.0
        %463 = vmatprep.subr.mxu0 0.0
        %464 = vmatpush1.msra.mxu0 0.0
        %465 = vmatprep.subr.mxu0 0.0
        %466 = vmatpush1.msra.mxu0 0.0
        %467 = vmatprep.subr.mxu0 0.0
        %468 = vmatpush1.msra.mxu0 0.0
        %469 = vmatprep.subr.mxu0 0.0
        %470 = vmatpush1.msra.mxu0 0.0
        %471 = vmatprep.subr.mxu0 0.0
        %472 = vmatpush1.msra.mxu0 0.0
        %473 = vmatprep.subr.mxu0 0.0
        %474 = vmatpush1.msra.mxu0 0.0
        %475 = vmatprep.subr.mxu0 0.0
        %476 = vmatpush1.msra.mxu0 0.0
        %477 = vmatprep.subr.mxu0 0.0
        %478 = vmatpush1.msra.mxu0 0.0
        %479 = vmatprep.subr.mxu0 0.0
        %480 = vmatpush1.msra.mxu0 0.0
        %481 = vmatprep.subr.mxu0 0.0
        %482 = vmatpush1.msra.mxu0 0.0
        %483 = vmatprep.subr.mxu0 0.0
        %484 = vmatpush1.msra.mxu0 0.0
        %485 = vmatprep.subr.mxu0 0.0
        %486 = vmatpush1.msra.mxu0 0.0
        %487 = vmatprep.subr.mxu0 0.0
        %488 = vmatpush1.msra.mxu0 0.0
        %489 = vmatprep.subr.mxu0 0.0
        %490 = vmatpush1.msra.mxu0 0.0
        %491 = vmatprep.subr.mxu0 0.0
        %492 = vmatpush1.msra.mxu0 0.0
        %493 = vmatprep.subr.mxu0 0.0
        %494 = vmatpush1.msra.mxu0 0.0
        %495 = vmatprep.mubr.f32.mxu0 0.0
        %496 = vmatmul.mubr.f32.gmra.mrb[0].mxu0 %v429
        %v497 = vpop.f32.mrb[0].mxu0
        %v498 = vadd.f32 0.0, %v497
        %v499 = vpop.f32.mrb[0].mxu0
        %500 = vdwg.mxu0
        %v501 = vld [vmem:[#allocation2] sm:$0x1]
        %v502 = vadd.f32 %v501, %v498
        %503 = vst [vmem:[#allocation2] sm:$0x1] %v502
        %v504 = vld [vmem:[%s317] sm:$0x1]
        %505 = vmatprep.subr.mxu0 0.0
        %506 = vmatpush1.msra.mxu0 %v345
        %507 = vmatprep.subr.mxu0 0.0
        %508 = vmatpush1.msra.mxu0 %v346
        %509 = vmatprep.subr.mxu0 0.0
        %510 = vmatpush1.msra.mxu0 0.0
        %511 = vmatprep.subr.mxu0 0.0
        %512 = vmatpush1.msra.mxu0 0.0
        %513 = vmatprep.subr.mxu0 0.0
        %514 = vmatpush1.msra.mxu0 0.0
        %515 = vmatprep.subr.mxu0 0.0
        %516 = vmatpush1.msra.mxu0 0.0
        %517 = vmatprep.subr.mxu0 0.0
        %518 = vmatpush1.msra.mxu0 0.0
        %519 = vmatprep.subr.mxu0 0.0
        %520 = vmatpush1.msra.mxu0 0.0
        %521 = vmatprep.subr.mxu0 0.0
        %522 = vmatpush1.msra.mxu0 0.0
        %523 = vmatprep.subr.mxu0 0.0
        %524 = vmatpush1.msra.mxu0 0.0
        %525 = vmatprep.subr.mxu0 0.0
        %526 = vmatpush1.msra.mxu0 0.0
        %527 = vmatprep.subr.mxu0 0.0
        %528 = vmatpush1.msra.mxu0 0.0
        %529 = vmatprep.subr.mxu0 0.0
        %530 = vmatpush1.msra.mxu0 0.0
        %531 = vmatprep.subr.mxu0 0.0
        %532 = vmatpush1.msra.mxu0 0.0
        %533 = vmatprep.subr.mxu0 0.0
        %534 = vmatpush1.msra.mxu0 0.0
        %535 = vmatprep.subr.mxu0 0.0
        %536 = vmatpush1.msra.mxu0 0.0
        %537 = vmatprep.subr.mxu0 0.0
        %538 = vmatpush1.msra.mxu0 0.0
        %539 = vmatprep.subr.mxu0 0.0
        %540 = vmatpush1.msra.mxu0 0.0
        %541 = vmatprep.subr.mxu0 0.0
        %542 = vmatpush1.msra.mxu0 0.0
        %543 = vmatprep.subr.mxu0 0.0
        %544 = vmatpush1.msra.mxu0 0.0
        %545 = vmatprep.subr.mxu0 0.0
        %546 = vmatpush1.msra.mxu0 0.0
        %547 = vmatprep.subr.mxu0 0.0
        %548 = vmatpush1.msra.mxu0 0.0
        %549 = vmatprep.subr.mxu0 0.0
        %550 = vmatpush1.msra.mxu0 0.0
        %551 = vmatprep.subr.mxu0 0.0
        %552 = vmatpush1.msra.mxu0 0.0
        %553 = vmatprep.subr.mxu0 0.0
        %554 = vmatpush1.msra.mxu0 0.0
        %555 = vmatprep.subr.mxu0 0.0
        %556 = vmatpush1.msra.mxu0 0.0
        %557 = vmatprep.subr.mxu0 0.0
        %558 = vmatpush1.msra.mxu0 0.0
        %559 = vmatprep.subr.mxu0 0.0
        %560 = vmatpush1.msra.mxu0 0.0
        %561 = vmatprep.subr.mxu0 0.0
        %562 = vmatpush1.msra.mxu0 0.0
        %563 = vmatprep.subr.mxu0 0.0
        %564 = vmatpush1.msra.mxu0 0.0
        %565 = vmatprep.subr.mxu0 0.0
        %566 = vmatpush1.msra.mxu0 0.0
        %567 = vmatprep.subr.mxu0 0.0
        %568 = vmatpush1.msra.mxu0 0.0
        %569 = vmatprep.mubr.f32.mxu0 0.0
        %570 = vmatmul.mubr.f32.gmra.mrb[0].mxu0 %v429
        %v571 = vpop.f32.mrb[0].mxu0
        %v572 = vadd.f32 0.0, %v571
        %v573 = vpop.f32.mrb[0].mxu0
        %574 = vdwg.mxu0
        %v575 = vadd.f32 %v504, %v572
        %576 = vst [vmem:[%s317] sm:$0x1] %v575
        %p577 = scmp.eq.s32.totalorder %s29, 3
        // Predicated region
        $region45: #{tpu_custom_call.1} parent=39 // pred_check
          %p578 = pneg %p577
        $region46: #{tpu_custom_call.1} parent=39 // pred_check_branch
          %580 = sbr.rel (%p578) target = $region48
        $region47: #{tpu_custom_call.1} parent=39 // pred_region
          %v581 = vld [vmem:[#allocation2] sm:$0x1]
          %vm582 = vcmask 1040384
          %v583 = vsel %vm582, %v581, 0.0
          %584 = vadd.xlane.f32.xlu0 %v583
          %v585 = vpop.xlane.xlu0 %584
          %v586 = vrot.slane %v585, 4
          %v587 = vadd.f32 %v585, %v586
          %v588 = vrot.slane %v587, 2
          %v589 = vadd.f32 %v587, %v588
          %v590 = vrot.slane %v589, 1
          %v591 = vadd.f32 %v589, %v590
          %s592 = vtos %v591
          %v593 = vstv %s592
          %594 = vst [vmem:[%s311] sm:$0x1] %v593
        $region48: #{tpu_custom_call.1} parent=39 // pred_fallthru
          _
        %s595 = sand.u32 %s168, 1
        %s596 = scalar_lea.sflag [#allocation4], %s595
        %s597 = sand.u32 %s168, 1
        %s598 = scalar_lea.vmem [#allocation3], %s597
        %s599 = sand.u32 %s194, 1
        %s600 = scalar_lea.sflag [#allocation6], %s599
        %s601 = sand.u32 %s194, 1
        %s602 = scalar_lea.vmem [#allocation5], %s601
        // Predicated region
        $region49: #{tpu_custom_call.1} parent=39 // pred_check
          %p603 = pneg %p178
        $region50: #{tpu_custom_call.1} parent=39 // pred_check_branch
          %605 = sbr.rel (%p603) target = $region52
        $region51: #{tpu_custom_call.1} parent=39 // pred_region
          %s607 = ssub.s32 16, 16
          %608 = vsyncadd %s596, %s607
          %s609 = smul.addr %s28, 16
          %s610 = scalar_lea.hbm %s5, %s609
          %s612 = sshll.u32 %s598, 4
          %s613 = int_to_ptr.vmem [resolvable:$true] %s612
          %615 = dma.vmem_to_hbm [thread:$0]  %s613, 16, %s610, %s596
        $region52: #{tpu_custom_call.1} parent=39 // pred_fallthru
          _
        // Predicated region
        $region53: #{tpu_custom_call.1} parent=39 // pred_check
          %p616 = pneg %p204
        $region54: #{tpu_custom_call.1} parent=39 // pred_check_branch
          %618 = sbr.rel (%p616) target = $region56
        $region55: #{tpu_custom_call.1} parent=39 // pred_region
          %s620 = ssub.s32 16, 16
          %621 = vsyncadd %s600, %s620
          %s622 = smul.addr %s28, 16
          %s623 = scalar_lea.hbm %s6, %s622
          %s625 = sshll.u32 %s602, 4
          %s626 = int_to_ptr.vmem [resolvable:$true] %s625
          %628 = dma.vmem_to_hbm [thread:$0]  %s626, 16, %s623, %s600
        $region56: #{tpu_custom_call.1} parent=39 // pred_fallthru
          _
      $region40: #{tpu_custom_call.1} parent=5 // pred_fallthru
        _
      %p629 = scmp.le.s32.totalorder 2, %s19
      // Predicated region
      $region57: #{tpu_custom_call.1} parent=5 // pred_check
        %p630 = pneg %p629
      $region58: #{tpu_custom_call.1} parent=5 // pred_check_branch
        %632 = sbr.rel (%p630) target = $region60
      $region59: #{tpu_custom_call.1} parent=5 // pred_region
        %s633 = ssub.s32 %s19, 2
        // Predicated region
        $region61: #{tpu_custom_call.1} parent=59 // pred_check
          %p634 = pneg %p184
        $region62: #{tpu_custom_call.1} parent=59 // pred_check_branch
          %636 = sbr.rel (%p634) target = $region64
        $region63: #{tpu_custom_call.1} parent=59 // pred_region
          %s637 = sand.u32 %s169, 1
          %s638 = scalar_lea.sflag [#allocation4], %s637
          %s639 = sand.u32 %s169, 1
          %s640 = scalar_lea.vmem [#allocation3], %s639
          %641 = dma.done %s638, 16
        $region64: #{tpu_custom_call.1} parent=59 // pred_fallthru
          _
        // Predicated region
        $region65: #{tpu_custom_call.1} parent=59 // pred_check
          %p642 = pneg %p210
        $region66: #{tpu_custom_call.1} parent=59 // pred_check_branch
          %644 = sbr.rel (%p642) target = $region68
        $region67: #{tpu_custom_call.1} parent=59 // pred_region
          %s645 = sand.u32 %s195, 1
          %s646 = scalar_lea.sflag [#allocation6], %s645
          %s647 = sand.u32 %s195, 1
          %s648 = scalar_lea.vmem [#allocation5], %s647
          %649 = dma.done %s646, 16
        $region68: #{tpu_custom_call.1} parent=59 // pred_fallthru
          _
      $region60: #{tpu_custom_call.1} parent=5 // pred_fallthru
        _
    $region6: #{tpu_custom_call.1} parent=1 // loop_footer
      %s23 = sadd.s32 1, %s19
    $region7: #{tpu_custom_call.1} parent=1 // loop_footer_branch
      %18 = sbr.rel target = $region3
    $region8: #{tpu_custom_call.1} parent=1 // loop_exit
      _
    %650 = vsyncpa [#allocation4], 1
    %s651 = scalar_lea.sflag [#allocation4], 1
    %652 = vsyncpa %s651, 1
    %653 = vsyncpa [#allocation6], 1
    %s654 = scalar_lea.sflag [#allocation6], 1
    %655 = vsyncpa %s654, 1

</llo_original>
